<compile_context>
chip_gen: v6e
topology: v6e:2x2x1
jax: 0.10.0
libtpu: 0.0.40
codegen_flags: <defaults>
</compile_context>

<pallas_src>
import math

import jax
import jax.numpy as jnp
from jax.experimental import pallas as pl
from jax.experimental.pallas import tpu as pltpu

NUM_Z = 3
NOISE_VAR = 0.1

F_PAD = 24      # all layer widths (3/20/10/2) zero-padded to this (multiple of 8)
OUT_ROWS = 8    # sublane-aligned slab of output rows stored by the kernel (>= 2)

# layer order and true (out, in) shapes, PyTorch nn.Linear layout
_LAYERS = [
    ("g1", 20, NUM_Z), ("g2", 10, 20), ("g3", 2, 10),
    ("d1", 20, 2), ("d2", 10, 20), ("d3", 20, 10), ("d4", 2, 20),
]


# ----------------------------- Pallas kernel ------------------------------ #
def _implicit_denoising_kernel(z_ref, eps_ref, w_ref, b_ref, out_ref):
    """z_ref/eps_ref: (F_PAD, T) zero-padded below the real feature rows.
    w_ref: (7, F_PAD, F_PAD), b_ref: (7, F_PAD, 1) zero-padded packed params.
    out_ref: (OUT_ROWS, 2*T); lanes [0,T) = denoised clean, [T,2T) = denoised noisy.
    """

    def layer(i, x, relu=True):
        # W @ X + b  (bias broadcast along the lane/batch axis)
        h = jnp.dot(w_ref[i], x, preferred_element_type=jnp.float32) + b_ref[i]
        return jnp.maximum(h, 0.0) if relu else h

    # generator: 3 -> 20 -> 10 -> 2 (all zero-padded to F_PAD rows)
    h = layer(0, z_ref[...])
    h = layer(1, h)
    samples = layer(2, h, relu=False)        # rows 0:2 = samples, rest exactly 0
    noisy = samples + eps_ref[...]           # eps zero-padded below row 2

    # single fused denoiser pass over [clean | noisy] concatenated along lanes
    x = jnp.concatenate([samples, noisy], axis=-1)   # (F_PAD, 2*T), lane-dense
    h = layer(3, x)
    h = layer(4, h)
    h = layer(5, h)
    y = layer(6, h, relu=False)                      # rows 0:2 valid, rest 0

    out_ref[...] = y[:OUT_ROWS, :]                   # aligned, unmasked store


# --------------------------- parameter packing ----------------------------- #
def _pack_params(params):
    """Pack the 7 (out,in) weights / (out,) biases into two zero-padded blobs."""
    w_pack = jnp.zeros((len(_LAYERS), F_PAD, F_PAD), jnp.float32)
    b_pack = jnp.zeros((len(_LAYERS), F_PAD, 1), jnp.float32)
    for i, (name, fan_out, fan_in) in enumerate(_LAYERS):
        w_pack = w_pack.at[i, :fan_out, :fan_in].set(params[name + "w"])
        b_pack = b_pack.at[i, :fan_out, 0].set(params[name + "b"])
    return w_pack, b_pack


# ------------------------------ JAX wrapper -------------------------------- #
def implicit_denoising_forward(params, z_rnd, eps_rnd, *, batch_tile=None):
    B = z_rnd.shape[0]
    if batch_tile is None:
        # One big tile for small batches (grid=(1,)); for large batches use
        # >=512-lane tiles so the 'parallel' axis has >=2 steps (v7x megacore).
        batch_tile = B if B <= 1024 else 512
    assert B % batch_tile == 0, "batch must be a multiple of batch_tile"
    n_tiles = B // batch_tile

    # feature-major, zero-padded, lane-dense activations: (F_PAD, B)
    z_t = jnp.zeros((F_PAD, B), jnp.float32).at[:NUM_Z, :].set(z_rnd.T)
    eps_t = jnp.zeros((F_PAD, B), jnp.float32).at[:2, :].set(eps_rnd.T)
    w_pack, b_pack = _pack_params(params)

    out = pl.pallas_call(
        _implicit_denoising_kernel,
        grid=(n_tiles,),
        in_specs=[
            pl.BlockSpec((F_PAD, batch_tile), lambda i: (0, i)),   # z tile
            pl.BlockSpec((F_PAD, batch_tile), lambda i: (0, i)),   # eps tile
            pl.BlockSpec(w_pack.shape, lambda i: (0, 0, 0)),       # resident weights
            pl.BlockSpec(b_pack.shape, lambda i: (0, 0, 0)),       # resident biases
        ],
        out_specs=pl.BlockSpec((OUT_ROWS, 2 * batch_tile), lambda i: (0, i)),
        out_shape=jax.ShapeDtypeStruct((OUT_ROWS, 2 * B), jnp.float32),
        compiler_params=pltpu.CompilerParams(
            dimension_semantics=("parallel",)),
    )(z_t, eps_t, w_pack, b_pack)

    # de-interleave per-tile [clean | noisy] lane blocks; return [B, 2] each
    out4 = out.reshape(OUT_ROWS, n_tiles, 2, batch_tile)
    denoised_clean = out4[:2, :, 0, :].reshape(2, B).T
    denoised_noisy = out4[:2, :, 1, :].reshape(2, B).T
    return denoised_clean, denoised_noisy


# --------------------------- parameter init -------------------------------- #
def init_params(key):
    """PyTorch nn.Linear default init: U[-1/sqrt(fan_in), 1/sqrt(fan_in)].
    Weights kept in native PyTorch (out, in) layout; biases as (out,)."""
    params = {}
    for name, fan_out, fan_in in _LAYERS:
        key, kw, kb = jax.random.split(key, 3)
        bound = 1.0 / math.sqrt(fan_in)
        params[name + "w"] = jax.random.uniform(
            kw, (fan_out, fan_in), jnp.float32, -bound, bound)
        params[name + "b"] = jax.random.uniform(
            kb, (fan_out,), jnp.float32, -bound, bound)
    return params


# --------------------------- pure-JAX reference ----------------------------- #
def reference_forward(params, z_rnd, eps_rnd):
    def lin(x, w, b):
        return x @ w.T + b

    relu = lambda x: jnp.maximum(x, 0.0)

    h = relu(lin(z_rnd, params["g1w"], params["g1b"]))
    h = relu(lin(h, params["g2w"], params["g2b"]))
    samples = lin(h, params["g3w"], params["g3b"])
    noisy = samples + eps_rnd

    def den(x):
        h = relu(lin(x, params["d1w"], params["d1b"]))
        h = relu(lin(h, params["d2w"], params["d2b"]))
        h = relu(lin(h, params["d3w"], params["d3b"]))
        return lin(h, params["d4w"], params["d4b"])

    return den(samples), den(noisy)


# --------------------------------- main ------------------------------------ #
if __name__ == "__main__":
    key = jax.random.PRNGKey(0)
    key, k_param, k_x, k_z, k_eps = jax.random.split(key, 5)

    B = 256  # args.batch_size; multiple of 128 keeps the batch/lane axis dense

    # x is accepted by the PyTorch forward() but only its batch size matters
    x = jax.random.normal(k_x, (B, 2), jnp.float32)

    params = init_params(k_param)

    # forward-pass randomness (torch.randn equivalents), made deterministic
    z_rnd = jax.random.normal(k_z, (B, NUM_Z), jnp.float32)
    eps_rnd = math.sqrt(NOISE_VAR) * jax.random.normal(k_eps, (B, 2), jnp.float32)

    out_clean, out_noisy = implicit_denoising_forward(params, z_rnd, eps_rnd)
    jax.block_until_ready((out_clean, out_noisy))

    ref_clean, ref_noisy = reference_forward(params, z_rnd, eps_rnd)
    assert out_clean.shape == (B, 2) and out_noisy.shape == (B, 2)
    assert jnp.allclose(out_clean, ref_clean, rtol=1e-4, atol=1e-5)
    assert jnp.allclose(out_noisy, ref_noisy, rtol=1e-4, atol=1e-5)

    print("KERNEL_OK")
</pallas_src>

<mosaic_0001>
module attributes {stable_mosaic.version = 11 : i64} {
  func.func @_implicit_denoising_kernel(%arg0: i32, %arg1: memref<24x256xf32, #tpu.memory_space<vmem>>, %arg2: memref<24x256xf32, #tpu.memory_space<vmem>>, %arg3: memref<7x24x24xf32, #tpu.memory_space<vmem>>, %arg4: memref<7x24x1xf32, #tpu.memory_space<vmem>>, %arg5: memref<8x512xf32, #tpu.memory_space<vmem>>) attributes {dimension_semantics = [#tpu.dimension_semantics<parallel>], iteration_bounds = array<i64: 1>, scalar_prefetch = 0 : i64, scratch_operands = 0 : i64, tpu.core_type = #tpu.core_type<tc>, window_params = [{transform_indices = @transform_0, window_bounds = array<i64: 24, 256>}, {transform_indices = @transform_1, window_bounds = array<i64: 24, 256>}, {pipeline_mode = #tpu.pipeline_mode<synchronous>, transform_indices = @transform_2, window_bounds = array<i64: 7, 24, 24>}, {pipeline_mode = #tpu.pipeline_mode<synchronous>, transform_indices = @transform_3, window_bounds = array<i64: 7, 24, 1>}, {transform_indices = @transform_4, window_bounds = array<i64: 8, 512>}]} {
    %c0 = arith.constant 0 : index
    %c0_0 = arith.constant 0 : index
    %0 = vector.load %arg1[%c0, %c0_0] : memref<24x256xf32, #tpu.memory_space<vmem>>, vector<24x256xf32>
    %c0_1 = arith.constant 0 : index
    %c0_2 = arith.constant 0 : index
    %c0_3 = arith.constant 0 : index
    %1 = vector.load %arg3[%c0_1, %c0_2, %c0_3] : memref<7x24x24xf32, #tpu.memory_space<vmem>>, vector<1x24x24xf32>
    %2 = vector.shape_cast %1 : vector<1x24x24xf32> to vector<24x24xf32>
    %cst = arith.constant dense<0.000000e+00> : vector<24x256xf32>
    %3 = tpu.matmul %2, %0, %cst {dimension_numbers = #tpu.dot_dimension_numbers<[1], [0], [0], [1], [0, 0, 1, 1], [], []>} : vector<24x24xf32>, vector<24x256xf32>, vector<24x256xf32> -> vector<24x256xf32>
    %c0_4 = arith.constant 0 : index
    %c0_5 = arith.constant 0 : index
    %c0_6 = arith.constant 0 : index
    %4 = vector.load %arg4[%c0_4, %c0_5, %c0_6] : memref<7x24x1xf32, #tpu.memory_space<vmem>>, vector<1x24x1xf32>
    %5 = vector.shape_cast %4 : vector<1x24x1xf32> to vector<24x1xf32>
    %6 = vector.broadcast %5 : vector<24x1xf32> to vector<24x256xf32>
    %7 = arith.addf %3, %6 : vector<24x256xf32>
    %cst_7 = arith.constant 0.000000e+00 : f32
    %8 = vector.broadcast %cst_7 : f32 to vector<24x256xf32>
    %9 = arith.maximumf %7, %8 : vector<24x256xf32>
    %c1 = arith.constant 1 : index
    %c0_8 = arith.constant 0 : index
    %c0_9 = arith.constant 0 : index
    %10 = vector.load %arg3[%c1, %c0_8, %c0_9] : memref<7x24x24xf32, #tpu.memory_space<vmem>>, vector<1x24x24xf32>
    %11 = vector.shape_cast %10 : vector<1x24x24xf32> to vector<24x24xf32>
    %cst_10 = arith.constant dense<0.000000e+00> : vector<24x256xf32>
    %12 = tpu.matmul %11, %9, %cst_10 {dimension_numbers = #tpu.dot_dimension_numbers<[1], [0], [0], [1], [0, 0, 1, 1], [], []>} : vector<24x24xf32>, vector<24x256xf32>, vector<24x256xf32> -> vector<24x256xf32>
    %c1_11 = arith.constant 1 : index
    %c0_12 = arith.constant 0 : index
    %c0_13 = arith.constant 0 : index
    %13 = vector.load %arg4[%c1_11, %c0_12, %c0_13] : memref<7x24x1xf32, #tpu.memory_space<vmem>>, vector<1x24x1xf32>
    %14 = vector.shape_cast %13 : vector<1x24x1xf32> to vector<24x1xf32>
    %15 = vector.broadcast %14 : vector<24x1xf32> to vector<24x256xf32>
    %16 = arith.addf %12, %15 : vector<24x256xf32>
    %cst_14 = arith.constant 0.000000e+00 : f32
    %17 = vector.broadcast %cst_14 : f32 to vector<24x256xf32>
    %18 = arith.maximumf %16, %17 : vector<24x256xf32>
    %c2 = arith.constant 2 : index
    %c0_15 = arith.constant 0 : index
    %c0_16 = arith.constant 0 : index
    %19 = vector.load %arg3[%c2, %c0_15, %c0_16] : memref<7x24x24xf32, #tpu.memory_space<vmem>>, vector<1x24x24xf32>
    %20 = vector.shape_cast %19 : vector<1x24x24xf32> to vector<24x24xf32>
    %cst_17 = arith.constant dense<0.000000e+00> : vector<24x256xf32>
    %21 = tpu.matmul %20, %18, %cst_17 {dimension_numbers = #tpu.dot_dimension_numbers<[1], [0], [0], [1], [0, 0, 1, 1], [], []>} : vector<24x24xf32>, vector<24x256xf32>, vector<24x256xf32> -> vector<24x256xf32>
    %c2_18 = arith.constant 2 : index
    %c0_19 = arith.constant 0 : index
    %c0_20 = arith.constant 0 : index
    %22 = vector.load %arg4[%c2_18, %c0_19, %c0_20] : memref<7x24x1xf32, #tpu.memory_space<vmem>>, vector<1x24x1xf32>
    %23 = vector.shape_cast %22 : vector<1x24x1xf32> to vector<24x1xf32>
    %24 = vector.broadcast %23 : vector<24x1xf32> to vector<24x256xf32>
    %25 = arith.addf %21, %24 : vector<24x256xf32>
    %c0_21 = arith.constant 0 : index
    %c0_22 = arith.constant 0 : index
    %26 = vector.load %arg2[%c0_21, %c0_22] : memref<24x256xf32, #tpu.memory_space<vmem>>, vector<24x256xf32>
    %27 = arith.addf %25, %26 : vector<24x256xf32>
    %28 = tpu.concatenate %25, %27 in 1 : vector<24x256xf32>, vector<24x256xf32> -> vector<24x512xf32>
    %c3 = arith.constant 3 : index
    %c0_23 = arith.constant 0 : index
    %c0_24 = arith.constant 0 : index
    %29 = vector.load %arg3[%c3, %c0_23, %c0_24] : memref<7x24x24xf32, #tpu.memory_space<vmem>>, vector<1x24x24xf32>
    %30 = vector.shape_cast %29 : vector<1x24x24xf32> to vector<24x24xf32>
    %cst_25 = arith.constant dense<0.000000e+00> : vector<24x512xf32>
    %31 = tpu.matmul %30, %28, %cst_25 {dimension_numbers = #tpu.dot_dimension_numbers<[1], [0], [0], [1], [0, 0, 1, 1], [], []>} : vector<24x24xf32>, vector<24x512xf32>, vector<24x512xf32> -> vector<24x512xf32>
    %c3_26 = arith.constant 3 : index
    %c0_27 = arith.constant 0 : index
    %c0_28 = arith.constant 0 : index
    %32 = vector.load %arg4[%c3_26, %c0_27, %c0_28] : memref<7x24x1xf32, #tpu.memory_space<vmem>>, vector<1x24x1xf32>
    %33 = vector.shape_cast %32 : vector<1x24x1xf32> to vector<24x1xf32>
    %34 = vector.broadcast %33 : vector<24x1xf32> to vector<24x512xf32>
    %35 = arith.addf %31, %34 : vector<24x512xf32>
    %cst_29 = arith.constant 0.000000e+00 : f32
    %36 = vector.broadcast %cst_29 : f32 to vector<24x512xf32>
    %37 = arith.maximumf %35, %36 : vector<24x512xf32>
    %c4 = arith.constant 4 : index
    %c0_30 = arith.constant 0 : index
    %c0_31 = arith.constant 0 : index
    %38 = vector.load %arg3[%c4, %c0_30, %c0_31] : memref<7x24x24xf32, #tpu.memory_space<vmem>>, vector<1x24x24xf32>
    %39 = vector.shape_cast %38 : vector<1x24x24xf32> to vector<24x24xf32>
    %cst_32 = arith.constant dense<0.000000e+00> : vector<24x512xf32>
    %40 = tpu.matmul %39, %37, %cst_32 {dimension_numbers = #tpu.dot_dimension_numbers<[1], [0], [0], [1], [0, 0, 1, 1], [], []>} : vector<24x24xf32>, vector<24x512xf32>, vector<24x512xf32> -> vector<24x512xf32>
    %c4_33 = arith.constant 4 : index
    %c0_34 = arith.constant 0 : index
    %c0_35 = arith.constant 0 : index
    %41 = vector.load %arg4[%c4_33, %c0_34, %c0_35] : memref<7x24x1xf32, #tpu.memory_space<vmem>>, vector<1x24x1xf32>
    %42 = vector.shape_cast %41 : vector<1x24x1xf32> to vector<24x1xf32>
    %43 = vector.broadcast %42 : vector<24x1xf32> to vector<24x512xf32>
    %44 = arith.addf %40, %43 : vector<24x512xf32>
    %cst_36 = arith.constant 0.000000e+00 : f32
    %45 = vector.broadcast %cst_36 : f32 to vector<24x512xf32>
    %46 = arith.maximumf %44, %45 : vector<24x512xf32>
    %c5 = arith.constant 5 : index
    %c0_37 = arith.constant 0 : index
    %c0_38 = arith.constant 0 : index
    %47 = vector.load %arg3[%c5, %c0_37, %c0_38] : memref<7x24x24xf32, #tpu.memory_space<vmem>>, vector<1x24x24xf32>
    %48 = vector.shape_cast %47 : vector<1x24x24xf32> to vector<24x24xf32>
    %cst_39 = arith.constant dense<0.000000e+00> : vector<24x512xf32>
    %49 = tpu.matmul %48, %46, %cst_39 {dimension_numbers = #tpu.dot_dimension_numbers<[1], [0], [0], [1], [0, 0, 1, 1], [], []>} : vector<24x24xf32>, vector<24x512xf32>, vector<24x512xf32> -> vector<24x512xf32>
    %c5_40 = arith.constant 5 : index
    %c0_41 = arith.constant 0 : index
    %c0_42 = arith.constant 0 : index
    %50 = vector.load %arg4[%c5_40, %c0_41, %c0_42] : memref<7x24x1xf32, #tpu.memory_space<vmem>>, vector<1x24x1xf32>
    %51 = vector.shape_cast %50 : vector<1x24x1xf32> to vector<24x1xf32>
    %52 = vector.broadcast %51 : vector<24x1xf32> to vector<24x512xf32>
    %53 = arith.addf %49, %52 : vector<24x512xf32>
    %cst_43 = arith.constant 0.000000e+00 : f32
    %54 = vector.broadcast %cst_43 : f32 to vector<24x512xf32>
    %55 = arith.maximumf %53, %54 : vector<24x512xf32>
    %c6 = arith.constant 6 : index
    %c0_44 = arith.constant 0 : index
    %c0_45 = arith.constant 0 : index
    %56 = vector.load %arg3[%c6, %c0_44, %c0_45] : memref<7x24x24xf32, #tpu.memory_space<vmem>>, vector<1x24x24xf32>
    %57 = vector.shape_cast %56 : vector<1x24x24xf32> to vector<24x24xf32>
    %cst_46 = arith.constant dense<0.000000e+00> : vector<24x512xf32>
    %58 = tpu.matmul %57, %55, %cst_46 {dimension_numbers = #tpu.dot_dimension_numbers<[1], [0], [0], [1], [0, 0, 1, 1], [], []>} : vector<24x24xf32>, vector<24x512xf32>, vector<24x512xf32> -> vector<24x512xf32>
    %c6_47 = arith.constant 6 : index
    %c0_48 = arith.constant 0 : index
    %c0_49 = arith.constant 0 : index
    %59 = vector.load %arg4[%c6_47, %c0_48, %c0_49] : memref<7x24x1xf32, #tpu.memory_space<vmem>>, vector<1x24x1xf32>
    %60 = vector.shape_cast %59 : vector<1x24x1xf32> to vector<24x1xf32>
    %61 = vector.broadcast %60 : vector<24x1xf32> to vector<24x512xf32>
    %62 = arith.addf %58, %61 : vector<24x512xf32>
    %63 = vector.extract_strided_slice %62 {offsets = [0, 0], sizes = [8, 512], strides = [1, 1]} : vector<24x512xf32> to vector<8x512xf32>
    %c0_50 = arith.constant 0 : index
    %c0_51 = arith.constant 0 : index
    %64 = vector.load %arg5[%c0_50, %c0_51] : memref<8x512xf32, #tpu.memory_space<vmem>>, vector<8x512xf32>
    tpu.vector_store %arg5[%c0_50, %c0_51], %63 {strides = array<i32>} : memref<8x512xf32, #tpu.memory_space<vmem>>, vector<8x512xf32>,
    return
  }
  func.func @transform_0(%arg0: i32) -> (i32, i32) {
    %c0_i32 = arith.constant 0 : i32
    %c0_i32_0 = arith.constant 0 : i32
    return %c0_i32, %arg0 : i32, i32
  }
  func.func @transform_1(%arg0: i32) -> (i32, i32) {
    %c0_i32 = arith.constant 0 : i32
    %c0_i32_0 = arith.constant 0 : i32
    return %c0_i32, %arg0 : i32, i32
  }
  func.func @transform_2(%arg0: i32) -> (i32, i32, i32) {
    %c0_i32 = arith.constant 0 : i32
    %c0_i32_0 = arith.constant 0 : i32
    %c0_i32_1 = arith.constant 0 : i32
    %c0_i32_2 = arith.constant 0 : i32
    return %c0_i32, %c0_i32_0, %c0_i32_1 : i32, i32, i32
  }
  func.func @transform_3(%arg0: i32) -> (i32, i32, i32) {
    %c0_i32 = arith.constant 0 : i32
    %c0_i32_0 = arith.constant 0 : i32
    %c0_i32_1 = arith.constant 0 : i32
    %c0_i32_2 = arith.constant 0 : i32
    return %c0_i32, %c0_i32_0, %c0_i32_1 : i32, i32, i32
  }
  func.func @transform_4(%arg0: i32) -> (i32, i32) {
    %c0_i32 = arith.constant 0 : i32
    %c0_i32_0 = arith.constant 0 : i32
    return %c0_i32, %arg0 : i32, i32
  }
}

</mosaic_0001>

<llo_original>
// kernel: tpu_custom_call.1
$region0: #{tpu_custom_call.1}
  #allocation0 [shape = 'u32[]', space=smem, size = 0x4, offset = 0x4, fixed_abs, tag = 'smem constant byte address 0x4 - core index']
  #allocation1 [shape = 'u32[144,128]{1,0:T(1,128)}', space=vmem, size = 0x12000, scoped, tag = 'internal scratch']
  %s0 = inlined_call_operand.hbm [shape: f32[24,256], index: 0, kind: input, shape index: {}]
  %s1 = inlined_call_operand.hbm [shape: f32[24,256], index: 1, kind: input, shape index: {}]
  %s2 = inlined_call_operand.vmem [shape: f32[7,24,24], index: 2, kind: input, shape index: {}]
  %s3 = inlined_call_operand.vmem [shape: f32[7,24,1], index: 3, kind: input, shape index: {}]
  %s4 = inlined_call_operand.hbm [shape: f32[8,512], index: 4, kind: output, shape index: {}]
  %s5 = sld [smem:[#allocation0]]
  $region34: #{tpu_custom_call.1} parent=0
    _
  %s7 = ssub.s32 1, %s5
  %s8 = scalar_select 0, %s7, %s5
  $region1: #{tpu_custom_call.1} parent=0
    #allocation2 [shape = 'u8[24576]{0}', space=vmem, size = 0x6000, scoped, tag = 'input window, operand 0, single buffered']
    #allocation3 [shape = 's32[1]{0}', space=sflag, size = 0x4, scoped, tag = 'scoped memory for tpu_custom_call.1']
    #allocation4 [shape = 's32[1]{0}', space=sflag, size = 0x4, scoped, tag = 'scoped memory for tpu_custom_call.1']
    #allocation5 [shape = 'u8[24576]{0}', space=vmem, size = 0x6000, scoped, tag = 'input window, operand 1, single buffered']
    #allocation6 [shape = 's32[1]{0}', space=sflag, size = 0x4, scoped, tag = 'scoped memory for tpu_custom_call.1']
    #allocation7 [shape = 'u8[16384]{0}', space=vmem, size = 0x4000, scoped, tag = 'output window, operand 0, single buffered']
    %9 = vsyncpa [#allocation3], 0
    %10 = vsyncpa [#allocation6], 0
    %11 = vsyncpa [#allocation4], 0
    // Predicated region
    $region2: #{tpu_custom_call.1} parent=1 // pred_check
      _
    $region3: #{tpu_custom_call.1} parent=1 // pred_check_branch
      %13 = sbr.rel (0) target = $region5
    $region4: #{tpu_custom_call.1} parent=1 // pred_region
      %s15 = ssub.s32 768, 768
      %16 = vsyncadd [#allocation3], %s15
      %s17 = sshll.u32 [#allocation2], 4
      %s18 = int_to_ptr.vmem [resolvable:$true] %s17
      %23 = dma.hbm_to_vmem [thread:$0]  %s0, 768, %s18, [#allocation3], 256, 256, 16
    $region5: #{tpu_custom_call.1} parent=1 // pred_fallthru
      _
    // Predicated region
    $region6: #{tpu_custom_call.1} parent=1 // pred_check
      _
    $region7: #{tpu_custom_call.1} parent=1 // pred_check_branch
      %25 = sbr.rel (0) target = $region9
    $region8: #{tpu_custom_call.1} parent=1 // pred_region
      %s27 = ssub.s32 768, 768
      %28 = vsyncadd [#allocation6], %s27
      %s29 = sshll.u32 [#allocation5], 4
      %s30 = int_to_ptr.vmem [resolvable:$true] %s29
      %35 = dma.hbm_to_vmem [thread:$0]  %s1, 768, %s30, [#allocation6], 256, 256, 16
    $region9: #{tpu_custom_call.1} parent=1 // pred_fallthru
      _
    // Predicated region
    $region10: #{tpu_custom_call.1} parent=1 // pred_check
      _
    $region11: #{tpu_custom_call.1} parent=1 // pred_check_branch
      %37 = sbr.rel (0) target = $region13
    $region12: #{tpu_custom_call.1} parent=1 // pred_region
      _
    $region13: #{tpu_custom_call.1} parent=1 // pred_fallthru
      _
    // Predicated region
    $region14: #{tpu_custom_call.1} parent=1 // pred_check
      _
    $region15: #{tpu_custom_call.1} parent=1 // pred_check_branch
      %39 = sbr.rel (0) target = $region17
    $region16: #{tpu_custom_call.1} parent=1 // pred_region
      _
    $region17: #{tpu_custom_call.1} parent=1 // pred_fallthru
      _
    // Predicated region
    $region18: #{tpu_custom_call.1} parent=1 // pred_check
      _
    $region19: #{tpu_custom_call.1} parent=1 // pred_check_branch
      %41 = sbr.rel (0) target = $region21
    $region20: #{tpu_custom_call.1} parent=1 // pred_region
      %42 = dma.done [#allocation3], 768
    $region21: #{tpu_custom_call.1} parent=1 // pred_fallthru
      _
    // Predicated region
    $region22: #{tpu_custom_call.1} parent=1 // pred_check
      _
    $region23: #{tpu_custom_call.1} parent=1 // pred_check_branch
      %44 = sbr.rel (0) target = $region25
    $region24: #{tpu_custom_call.1} parent=1 // pred_region
      %45 = dma.done [#allocation6], 768
    $region25: #{tpu_custom_call.1} parent=1 // pred_fallthru
      _
    %v46 = vld [vmem:[#allocation2] sm:$0xff]
    %v47 = vld [vmem:[#allocation2 + $0x8] sm:$0xff]
    %v48 = vld [vmem:[#allocation2 + $0x10] sm:$0xff]
    %v49 = vld [vmem:[#allocation2 + $0x18] sm:$0xff]
    %v50 = vld [vmem:[#allocation2 + $0x20] sm:$0xff]
    %v51 = vld [vmem:[#allocation2 + $0x28] sm:$0xff]
    %v52 = vld [vmem:[%s2] sm:$0xff]
    %v53 = vld [vmem:[%s2 + $0x8] sm:$0xff]
    %v54 = vld [vmem:[%s2 + $0x10] sm:$0xff]
    %v55 = vld [vmem:[%s3] sm:$0xff]
    %v56 = vld [vmem:[%s3 + $0x8] sm:$0xff]
    %v57 = vld [vmem:[%s3 + $0x10] sm:$0xff]
    %59 = vset.pattern.permute.xlu0 0
    %60 = vperm.xlu0 %59, %v55
    %v61 = vpop.permute.xlu0 %60
    %64 = vset.pattern.permute.xlu0 0
    %65 = vperm.xlu0 %64, %v56
    %v66 = vpop.permute.xlu0 %65
    %69 = vset.pattern.permute.xlu0 0
    %70 = vperm.xlu0 %69, %v57
    %v71 = vpop.permute.xlu0 %70
    %vm73 = vcmask 195584
    %v75 = vsel %vm73, %v52, 0
    %v78 = vsel %vm73, %v53, 0
    %v81 = vsel %vm73, %v54, 0
    %83 = vmatprep.subr.mxu0 0.0
    %84 = vmatpush1.msra.mxu0 0.0
    %85 = vmatprep.subr.mxu0 0.0
    %86 = vmatpush1.msra.mxu0 0.0
    %87 = vmatprep.subr.mxu0 0.0
    %88 = vmatpush1.msra.mxu0 0.0
    %89 = vmatprep.subr.mxu0 0.0
    %90 = vmatpush1.msra.mxu0 0.0
    %91 = vmatprep.subr.mxu0 0.0
    %92 = vmatpush1.msra.mxu0 0.0
    %93 = vmatprep.subr.mxu0 0.0
    %94 = vmatpush1.msra.mxu0 0.0
    %95 = vmatprep.subr.mxu0 0.0
    %96 = vmatpush1.msra.mxu0 0.0
    %97 = vmatprep.subr.mxu0 0.0
    %98 = vmatpush1.msra.mxu0 0.0
    %99 = vmatprep.subr.mxu0 0.0
    %100 = vmatpush1.msra.mxu0 0.0
    %101 = vmatprep.subr.mxu0 0.0
    %102 = vmatpush1.msra.mxu0 0.0
    %103 = vmatprep.subr.mxu0 0.0
    %104 = vmatpush1.msra.mxu0 0.0
    %105 = vmatprep.subr.mxu0 0.0
    %106 = vmatpush1.msra.mxu0 0.0
    %107 = vmatprep.subr.mxu0 0.0
    %108 = vmatpush1.msra.mxu0 0.0
    %109 = vmatprep.subr.mxu0 %v51
    %110 = vmatpush1.msra.mxu0 %v50
    %111 = vmatprep.subr.mxu0 %v49
    %112 = vmatpush1.msra.mxu0 %v48
    %113 = vmatprep.subr.mxu0 %v47
    %114 = vmatpush1.msra.mxu0 %v46
    %115 = vmatprep.subr.mxu0 0.0
    %116 = vmatpush2.msra.mxu0 0.0
    %117 = vmatprep.subr.mxu0 0.0
    %118 = vmatpush2.msra.mxu0 0.0
    %119 = vmatprep.subr.mxu0 0.0
    %120 = vmatpush2.msra.mxu0 0.0
    %121 = vmatprep.subr.mxu0 0.0
    %122 = vmatpush2.msra.mxu0 0.0
    %123 = vmatprep.subr.mxu0 0.0
    %124 = vmatpush2.msra.mxu0 0.0
    %125 = vmatprep.subr.mxu0 0.0
    %126 = vmatpush2.msra.mxu0 0.0
    %127 = vmatprep.subr.mxu0 0.0
    %128 = vmatpush2.msra.mxu0 0.0
    %129 = vmatprep.subr.mxu0 0.0
    %130 = vmatpush2.msra.mxu0 0.0
    %131 = vmatprep.subr.mxu0 0.0
    %132 = vmatpush2.msra.mxu0 0.0
    %133 = vmatprep.subr.mxu0 0.0
    %134 = vmatpush2.msra.mxu0 0.0
    %135 = vmatprep.subr.mxu0 0.0
    %136 = vmatpush2.msra.mxu0 0.0
    %137 = vmatprep.subr.mxu0 0.0
    %138 = vmatpush2.msra.mxu0 0.0
    %139 = vmatprep.subr.mxu0 0.0
    %140 = vmatpush2.msra.mxu0 0.0
    %141 = vmatprep.subr.mxu0 0.0
    %142 = vmatpush2.msra.mxu0 0.0
    %143 = vmatprep.subr.mxu0 0.0
    %144 = vmatpush2.msra.mxu0 0.0
    %145 = vmatprep.subr.mxu0 0.0
    %146 = vmatpush2.msra.mxu0 0.0
    %147 = vmatprep.mubr.f32.mxu0 0.0
    %148 = vmatmul.mubr.f32.gmra.mxu0 %v75
    %v149 = vpop.f32.mrf.mxu0
    %v150 = vadd.f32 %v61, %v149
    %v151 = vpop.f32.mrf.mxu0
    %v152 = vadd.f32 %v61, %v151
    %153 = vmatprep.mubr.f32.mxu0 0.0
    %154 = vmatmul.mubr.f32.gmra.mxu0 %v78
    %v155 = vpop.f32.mrf.mxu0
    %v156 = vadd.f32 %v66, %v155
    %v157 = vpop.f32.mrf.mxu0
    %v158 = vadd.f32 %v66, %v157
    %159 = vmatprep.mubr.f32.mxu0 0.0
    %160 = vmatmul.mubr.f32.gmra.mxu0 %v81
    %v161 = vpop.f32.mrf.mxu0
    %v162 = vadd.f32 %v71, %v161
    %v163 = vpop.f32.mrf.mxu0
    %v164 = vadd.f32 %v71, %v163
    %165 = vdwg.mxu0
    %v166 = vmax.f32 %v150, 0.0
    %v167 = vmax.f32 %v152, 0.0
    %v168 = vmax.f32 %v156, 0.0
    %v169 = vmax.f32 %v158, 0.0
    %v170 = vmax.f32 %v162, 0.0
    %v171 = vmax.f32 %v164, 0.0
    %s172 = scalar_lea.vmem %s2, 24
    %v173 = vld [vmem:[%s172] sm:$0xff]
    %v174 = vld [vmem:[%s172 + $0x8] sm:$0xff]
    %v175 = vld [vmem:[%s172 + $0x10] sm:$0xff]
    %s176 = scalar_lea.vmem %s3, 24
    %v177 = vld [vmem:[%s176] sm:$0xff]
    %v178 = vld [vmem:[%s176 + $0x8] sm:$0xff]
    %v179 = vld [vmem:[%s176 + $0x10] sm:$0xff]
    %181 = vset.pattern.permute.xlu0 0
    %182 = vperm.xlu0 %181, %v177
    %v183 = vpop.permute.xlu0 %182
    %186 = vset.pattern.permute.xlu0 0
    %187 = vperm.xlu0 %186, %v178
    %v188 = vpop.permute.xlu0 %187
    %191 = vset.pattern.permute.xlu0 0
    %192 = vperm.xlu0 %191, %v179
    %v193 = vpop.permute.xlu0 %192
    %v196 = vsel %vm73, %v173, 0
    %v199 = vsel %vm73, %v174, 0
    %v202 = vsel %vm73, %v175, 0
    %204 = vmatprep.subr.mxu0 0.0
    %205 = vmatpush1.msra.mxu0 0.0
    %206 = vmatprep.subr.mxu0 0.0
    %207 = vmatpush1.msra.mxu0 0.0
    %208 = vmatprep.subr.mxu0 0.0
    %209 = vmatpush1.msra.mxu0 0.0
    %210 = vmatprep.subr.mxu0 0.0
    %211 = vmatpush1.msra.mxu0 0.0
    %212 = vmatprep.subr.mxu0 0.0
    %213 = vmatpush1.msra.mxu0 0.0
    %214 = vmatprep.subr.mxu0 0.0
    %215 = vmatpush1.msra.mxu0 0.0
    %216 = vmatprep.subr.mxu0 0.0
    %217 = vmatpush1.msra.mxu0 0.0
    %218 = vmatprep.subr.mxu0 0.0
    %219 = vmatpush1.msra.mxu0 0.0
    %220 = vmatprep.subr.mxu0 0.0
    %221 = vmatpush1.msra.mxu0 0.0
    %222 = vmatprep.subr.mxu0 0.0
    %223 = vmatpush1.msra.mxu0 0.0
    %224 = vmatprep.subr.mxu0 0.0
    %225 = vmatpush1.msra.mxu0 0.0
    %226 = vmatprep.subr.mxu0 0.0
    %227 = vmatpush1.msra.mxu0 0.0
    %228 = vmatprep.subr.mxu0 0.0
    %229 = vmatpush1.msra.mxu0 0.0
    %230 = vmatprep.subr.mxu0 %v171
    %231 = vmatpush1.msra.mxu0 %v170
    %232 = vmatprep.subr.mxu0 %v169
    %233 = vmatpush1.msra.mxu0 %v168
    %234 = vmatprep.subr.mxu0 %v167
    %235 = vmatpush1.msra.mxu0 %v166
    %236 = vmatprep.subr.mxu0 0.0
    %237 = vmatpush2.msra.mxu0 0.0
    %238 = vmatprep.subr.mxu0 0.0
    %239 = vmatpush2.msra.mxu0 0.0
    %240 = vmatprep.subr.mxu0 0.0
    %241 = vmatpush2.msra.mxu0 0.0
    %242 = vmatprep.subr.mxu0 0.0
    %243 = vmatpush2.msra.mxu0 0.0
    %244 = vmatprep.subr.mxu0 0.0
    %245 = vmatpush2.msra.mxu0 0.0
    %246 = vmatprep.subr.mxu0 0.0
    %247 = vmatpush2.msra.mxu0 0.0
    %248 = vmatprep.subr.mxu0 0.0
    %249 = vmatpush2.msra.mxu0 0.0
    %250 = vmatprep.subr.mxu0 0.0
    %251 = vmatpush2.msra.mxu0 0.0
    %252 = vmatprep.subr.mxu0 0.0
    %253 = vmatpush2.msra.mxu0 0.0
    %254 = vmatprep.subr.mxu0 0.0
    %255 = vmatpush2.msra.mxu0 0.0
    %256 = vmatprep.subr.mxu0 0.0
    %257 = vmatpush2.msra.mxu0 0.0
    %258 = vmatprep.subr.mxu0 0.0
    %259 = vmatpush2.msra.mxu0 0.0
    %260 = vmatprep.subr.mxu0 0.0
    %261 = vmatpush2.msra.mxu0 0.0
    %262 = vmatprep.subr.mxu0 0.0
    %263 = vmatpush2.msra.mxu0 0.0
    %264 = vmatprep.subr.mxu0 0.0
    %265 = vmatpush2.msra.mxu0 0.0
    %266 = vmatprep.subr.mxu0 0.0
    %267 = vmatpush2.msra.mxu0 0.0
    %268 = vmatprep.mubr.f32.mxu0 0.0
    %269 = vmatmul.mubr.f32.gmra.mxu0 %v196
    %v270 = vpop.f32.mrf.mxu0
    %v271 = vadd.f32 %v183, %v270
    %v272 = vpop.f32.mrf.mxu0
    %v273 = vadd.f32 %v183, %v272
    %274 = vmatprep.mubr.f32.mxu0 0.0
    %275 = vmatmul.mubr.f32.gmra.mxu0 %v199
    %v276 = vpop.f32.mrf.mxu0
    %v277 = vadd.f32 %v188, %v276
    %v278 = vpop.f32.mrf.mxu0
    %v279 = vadd.f32 %v188, %v278
    %280 = vmatprep.mubr.f32.mxu0 0.0
    %281 = vmatmul.mubr.f32.gmra.mxu0 %v202
    %v282 = vpop.f32.mrf.mxu0
    %v283 = vadd.f32 %v193, %v282
    %v284 = vpop.f32.mrf.mxu0
    %v285 = vadd.f32 %v193, %v284
    %286 = vdwg.mxu0
    %v287 = vmax.f32 %v271, 0.0
    %v288 = vmax.f32 %v273, 0.0
    %v289 = vmax.f32 %v277, 0.0
    %v290 = vmax.f32 %v279, 0.0
    %v291 = vmax.f32 %v283, 0.0
    %v292 = vmax.f32 %v285, 0.0
    %s293 = scalar_lea.vmem %s2, 48
    %v294 = vld [vmem:[%s293] sm:$0xff]
    %v295 = vld [vmem:[%s293 + $0x8] sm:$0xff]
    %v296 = vld [vmem:[%s293 + $0x10] sm:$0xff]
    %s297 = scalar_lea.vmem %s3, 48
    %v298 = vld [vmem:[%s297] sm:$0xff]
    %v299 = vld [vmem:[%s297 + $0x8] sm:$0xff]
    %v300 = vld [vmem:[%s297 + $0x10] sm:$0xff]
    %302 = vset.pattern.permute.xlu0 0
    %303 = vperm.xlu0 %302, %v298
    %v304 = vpop.permute.xlu0 %303
    %307 = vset.pattern.permute.xlu0 0
    %308 = vperm.xlu0 %307, %v299
    %v309 = vpop.permute.xlu0 %308
    %312 = vset.pattern.permute.xlu0 0
    %313 = vperm.xlu0 %312, %v300
    %v314 = vpop.permute.xlu0 %313
    %v317 = vsel %vm73, %v294, 0
    %v320 = vsel %vm73, %v295, 0
    %v323 = vsel %vm73, %v296, 0
    %325 = vmatprep.subr.mxu0 0.0
    %326 = vmatpush1.msra.mxu0 0.0
    %327 = vmatprep.subr.mxu0 0.0
    %328 = vmatpush1.msra.mxu0 0.0
    %329 = vmatprep.subr.mxu0 0.0
    %330 = vmatpush1.msra.mxu0 0.0
    %331 = vmatprep.subr.mxu0 0.0
    %332 = vmatpush1.msra.mxu0 0.0
    %333 = vmatprep.subr.mxu0 0.0
    %334 = vmatpush1.msra.mxu0 0.0
    %335 = vmatprep.subr.mxu0 0.0
    %336 = vmatpush1.msra.mxu0 0.0
    %337 = vmatprep.subr.mxu0 0.0
    %338 = vmatpush1.msra.mxu0 0.0
    %339 = vmatprep.subr.mxu0 0.0
    %340 = vmatpush1.msra.mxu0 0.0
    %341 = vmatprep.subr.mxu0 0.0
    %342 = vmatpush1.msra.mxu0 0.0
    %343 = vmatprep.subr.mxu0 0.0
    %344 = vmatpush1.msra.mxu0 0.0
    %345 = vmatprep.subr.mxu0 0.0
    %346 = vmatpush1.msra.mxu0 0.0
    %347 = vmatprep.subr.mxu0 0.0
    %348 = vmatpush1.msra.mxu0 0.0
    %349 = vmatprep.subr.mxu0 0.0
    %350 = vmatpush1.msra.mxu0 0.0
    %351 = vmatprep.subr.mxu0 %v292
    %352 = vmatpush1.msra.mxu0 %v291
    %353 = vmatprep.subr.mxu0 %v290
    %354 = vmatpush1.msra.mxu0 %v289
    %355 = vmatprep.subr.mxu0 %v288
    %356 = vmatpush1.msra.mxu0 %v287
    %357 = vmatprep.subr.mxu0 0.0
    %358 = vmatpush2.msra.mxu0 0.0
    %359 = vmatprep.subr.mxu0 0.0
    %360 = vmatpush2.msra.mxu0 0.0
    %361 = vmatprep.subr.mxu0 0.0
    %362 = vmatpush2.msra.mxu0 0.0
    %363 = vmatprep.subr.mxu0 0.0
    %364 = vmatpush2.msra.mxu0 0.0
    %365 = vmatprep.subr.mxu0 0.0
    %366 = vmatpush2.msra.mxu0 0.0
    %367 = vmatprep.subr.mxu0 0.0
    %368 = vmatpush2.msra.mxu0 0.0
    %369 = vmatprep.subr.mxu0 0.0
    %370 = vmatpush2.msra.mxu0 0.0
    %371 = vmatprep.subr.mxu0 0.0
    %372 = vmatpush2.msra.mxu0 0.0
    %373 = vmatprep.subr.mxu0 0.0
    %374 = vmatpush2.msra.mxu0 0.0
    %375 = vmatprep.subr.mxu0 0.0
    %376 = vmatpush2.msra.mxu0 0.0
    %377 = vmatprep.subr.mxu0 0.0
    %378 = vmatpush2.msra.mxu0 0.0
    %379 = vmatprep.subr.mxu0 0.0
    %380 = vmatpush2.msra.mxu0 0.0
    %381 = vmatprep.subr.mxu0 0.0
    %382 = vmatpush2.msra.mxu0 0.0
    %383 = vmatprep.subr.mxu0 0.0
    %384 = vmatpush2.msra.mxu0 0.0
    %385 = vmatprep.subr.mxu0 0.0
    %386 = vmatpush2.msra.mxu0 0.0
    %387 = vmatprep.subr.mxu0 0.0
    %388 = vmatpush2.msra.mxu0 0.0
    %389 = vmatprep.mubr.f32.mxu0 0.0
    %390 = vmatmul.mubr.f32.gmra.mxu0 %v317
    %v391 = vpop.f32.mrf.mxu0
    %v392 = vadd.f32 %v304, %v391
    %v393 = vpop.f32.mrf.mxu0
    %v394 = vadd.f32 %v304, %v393
    %395 = vmatprep.mubr.f32.mxu0 0.0
    %396 = vmatmul.mubr.f32.gmra.mxu0 %v320
    %v397 = vpop.f32.mrf.mxu0
    %v398 = vadd.f32 %v309, %v397
    %v399 = vpop.f32.mrf.mxu0
    %v400 = vadd.f32 %v309, %v399
    %401 = vmatprep.mubr.f32.mxu0 0.0
    %402 = vmatmul.mubr.f32.gmra.mxu0 %v323
    %v403 = vpop.f32.mrf.mxu0
    %v404 = vadd.f32 %v314, %v403
    %v405 = vpop.f32.mrf.mxu0
    %v406 = vadd.f32 %v314, %v405
    %407 = vdwg.mxu0
    %v408 = vld [vmem:[#allocation5] sm:$0xff]
    %v409 = vld [vmem:[#allocation5 + $0x8] sm:$0xff]
    %v410 = vld [vmem:[#allocation5 + $0x10] sm:$0xff]
    %v411 = vld [vmem:[#allocation5 + $0x18] sm:$0xff]
    %v412 = vld [vmem:[#allocation5 + $0x20] sm:$0xff]
    %v413 = vld [vmem:[#allocation5 + $0x28] sm:$0xff]
    %v414 = vadd.f32 %v392, %v408
    %v415 = vadd.f32 %v394, %v409
    %v416 = vadd.f32 %v398, %v410
    %v417 = vadd.f32 %v400, %v411
    %v418 = vadd.f32 %v404, %v412
    %v419 = vadd.f32 %v406, %v413
    %s420 = scalar_lea.vmem %s2, 72
    %v421 = vld [vmem:[%s420] sm:$0xff]
    %v422 = vld [vmem:[%s420 + $0x8] sm:$0xff]
    %v423 = vld [vmem:[%s420 + $0x10] sm:$0xff]
    %s424 = scalar_lea.vmem %s3, 72
    %v425 = vld [vmem:[%s424] sm:$0xff]
    %v426 = vld [vmem:[%s424 + $0x8] sm:$0xff]
    %v427 = vld [vmem:[%s424 + $0x10] sm:$0xff]
    %429 = vset.pattern.permute.xlu0 0
    %430 = vperm.xlu0 %429, %v425
    %v431 = vpop.permute.xlu0 %430
    %434 = vset.pattern.permute.xlu0 0
    %435 = vperm.xlu0 %434, %v426
    %v436 = vpop.permute.xlu0 %435
    %439 = vset.pattern.permute.xlu0 0
    %440 = vperm.xlu0 %439, %v427
    %v441 = vpop.permute.xlu0 %440
    %v444 = vsel %vm73, %v421, 0
    %v447 = vsel %vm73, %v422, 0
    %v450 = vsel %vm73, %v423, 0
    %452 = vmatprep.subr.mxu0 0.0
    %453 = vmatpush1.msra.mxu0 0.0
    %454 = vmatprep.subr.mxu0 0.0
    %455 = vmatpush1.msra.mxu0 0.0
    %456 = vmatprep.subr.mxu0 0.0
    %457 = vmatpush1.msra.mxu0 0.0
    %458 = vmatprep.subr.mxu0 0.0
    %459 = vmatpush1.msra.mxu0 0.0
    %460 = vmatprep.subr.mxu0 0.0
    %461 = vmatpush1.msra.mxu0 0.0
    %462 = vmatprep.subr.mxu0 0.0
    %463 = vmatpush1.msra.mxu0 0.0
    %464 = vmatprep.subr.mxu0 0.0
    %465 = vmatpush1.msra.mxu0 0.0
    %466 = vmatprep.subr.mxu0 0.0
    %467 = vmatpush1.msra.mxu0 0.0
    %468 = vmatprep.subr.mxu0 0.0
    %469 = vmatpush1.msra.mxu0 0.0
    %470 = vmatprep.subr.mxu0 0.0
    %471 = vmatpush1.msra.mxu0 0.0
    %472 = vmatprep.subr.mxu0 0.0
    %473 = vmatpush1.msra.mxu0 0.0
    %474 = vmatprep.subr.mxu0 0.0
    %475 = vmatpush1.msra.mxu0 0.0
    %476 = vmatprep.subr.mxu0 0.0
    %477 = vmatpush1.msra.mxu0 0.0
    %478 = vmatprep.subr.mxu0 %v406
    %479 = vmatpush1.msra.mxu0 %v404
    %480 = vmatprep.subr.mxu0 %v400
    %481 = vmatpush1.msra.mxu0 %v398
    %482 = vmatprep.subr.mxu0 %v394
    %483 = vmatpush1.msra.mxu0 %v392
    %484 = vmatprep.subr.mxu0 0.0
    %485 = vmatpush2.msra.mxu0 0.0
    %486 = vmatprep.subr.mxu0 0.0
    %487 = vmatpush2.msra.mxu0 0.0
    %488 = vmatprep.subr.mxu0 0.0
    %489 = vmatpush2.msra.mxu0 0.0
    %490 = vmatprep.subr.mxu0 0.0
    %491 = vmatpush2.msra.mxu0 0.0
    %492 = vmatprep.subr.mxu0 0.0
    %493 = vmatpush2.msra.mxu0 0.0
    %494 = vmatprep.subr.mxu0 0.0
    %495 = vmatpush2.msra.mxu0 0.0
    %496 = vmatprep.subr.mxu0 0.0
    %497 = vmatpush2.msra.mxu0 0.0
    %498 = vmatprep.subr.mxu0 0.0
    %499 = vmatpush2.msra.mxu0 0.0
    %500 = vmatprep.subr.mxu0 0.0
    %501 = vmatpush2.msra.mxu0 0.0
    %502 = vmatprep.subr.mxu0 0.0
    %503 = vmatpush2.msra.mxu0 0.0
    %504 = vmatprep.subr.mxu0 0.0
    %505 = vmatpush2.msra.mxu0 0.0
    %506 = vmatprep.subr.mxu0 0.0
    %507 = vmatpush2.msra.mxu0 0.0
    %508 = vmatprep.subr.mxu0 0.0
    %509 = vmatpush2.msra.mxu0 0.0
    %510 = vmatprep.subr.mxu0 0.0
    %511 = vmatpush2.msra.mxu0 0.0
    %512 = vmatprep.subr.mxu0 0.0
    %513 = vmatpush2.msra.mxu0 0.0
    %514 = vmatprep.subr.mxu0 0.0
    %515 = vmatpush2.msra.mxu0 0.0
    %516 = vmatprep.mubr.f32.mxu0 0.0
    %517 = vmatmul.mubr.f32.gmra.mxu0 %v444
    %v518 = vpop.f32.mrf.mxu0
    %v519 = vadd.f32 %v431, %v518
    %v520 = vpop.f32.mrf.mxu0
    %v521 = vadd.f32 %v431, %v520
    %522 = vmatprep.mubr.f32.mxu0 0.0
    %523 = vmatmul.mubr.f32.gmra.mxu0 %v447
    %v524 = vpop.f32.mrf.mxu0
    %v525 = vadd.f32 %v436, %v524
    %v526 = vpop.f32.mrf.mxu0
    %v527 = vadd.f32 %v436, %v526
    %528 = vmatprep.mubr.f32.mxu0 0.0
    %529 = vmatmul.mubr.f32.gmra.mxu0 %v450
    %v530 = vpop.f32.mrf.mxu0
    %v531 = vadd.f32 %v441, %v530
    %v532 = vpop.f32.mrf.mxu0
    %v533 = vadd.f32 %v441, %v532
    %534 = vdwg.mxu0
    %535 = vmatprep.subr.mxu0 0.0
    %536 = vmatpush1.msra.mxu0 0.0
    %537 = vmatprep.subr.mxu0 0.0
    %538 = vmatpush1.msra.mxu0 0.0
    %539 = vmatprep.subr.mxu0 0.0
    %540 = vmatpush1.msra.mxu0 0.0
    %541 = vmatprep.subr.mxu0 0.0
    %542 = vmatpush1.msra.mxu0 0.0
    %543 = vmatprep.subr.mxu0 0.0
    %544 = vmatpush1.msra.mxu0 0.0
    %545 = vmatprep.subr.mxu0 0.0
    %546 = vmatpush1.msra.mxu0 0.0
    %547 = vmatprep.subr.mxu0 0.0
    %548 = vmatpush1.msra.mxu0 0.0
    %549 = vmatprep.subr.mxu0 0.0
    %550 = vmatpush1.msra.mxu0 0.0
    %551 = vmatprep.subr.mxu0 0.0
    %552 = vmatpush1.msra.mxu0 0.0
    %553 = vmatprep.subr.mxu0 0.0
    %554 = vmatpush1.msra.mxu0 0.0
    %555 = vmatprep.subr.mxu0 0.0
    %556 = vmatpush1.msra.mxu0 0.0
    %557 = vmatprep.subr.mxu0 0.0
    %558 = vmatpush1.msra.mxu0 0.0
    %559 = vmatprep.subr.mxu0 0.0
    %560 = vmatpush1.msra.mxu0 0.0
    %561 = vmatprep.subr.mxu0 %v419
    %562 = vmatpush1.msra.mxu0 %v418
    %563 = vmatprep.subr.mxu0 %v417
    %564 = vmatpush1.msra.mxu0 %v416
    %565 = vmatprep.subr.mxu0 %v415
    %566 = vmatpush1.msra.mxu0 %v414
    %567 = vmatprep.subr.mxu0 0.0
    %568 = vmatpush2.msra.mxu0 0.0
    %569 = vmatprep.subr.mxu0 0.0
    %570 = vmatpush2.msra.mxu0 0.0
    %571 = vmatprep.subr.mxu0 0.0
    %572 = vmatpush2.msra.mxu0 0.0
    %573 = vmatprep.subr.mxu0 0.0
    %574 = vmatpush2.msra.mxu0 0.0
    %575 = vmatprep.subr.mxu0 0.0
    %576 = vmatpush2.msra.mxu0 0.0
    %577 = vmatprep.subr.mxu0 0.0
    %578 = vmatpush2.msra.mxu0 0.0
    %579 = vmatprep.subr.mxu0 0.0
    %580 = vmatpush2.msra.mxu0 0.0
    %581 = vmatprep.subr.mxu0 0.0
    %582 = vmatpush2.msra.mxu0 0.0
    %583 = vmatprep.subr.mxu0 0.0
    %584 = vmatpush2.msra.mxu0 0.0
    %585 = vmatprep.subr.mxu0 0.0
    %586 = vmatpush2.msra.mxu0 0.0
    %587 = vmatprep.subr.mxu0 0.0
    %588 = vmatpush2.msra.mxu0 0.0
    %589 = vmatprep.subr.mxu0 0.0
    %590 = vmatpush2.msra.mxu0 0.0
    %591 = vmatprep.subr.mxu0 0.0
    %592 = vmatpush2.msra.mxu0 0.0
    %593 = vmatprep.subr.mxu0 0.0
    %594 = vmatpush2.msra.mxu0 0.0
    %595 = vmatprep.subr.mxu0 0.0
    %596 = vmatpush2.msra.mxu0 0.0
    %597 = vmatprep.subr.mxu0 0.0
    %598 = vmatpush2.msra.mxu0 0.0
    %599 = vmatprep.mubr.f32.mxu0 0.0
    %600 = vmatmul.mubr.f32.gmra.mxu0 %v444
    %v601 = vpop.f32.mrf.mxu0
    %v602 = vadd.f32 %v431, %v601
    %v603 = vpop.f32.mrf.mxu0
    %v604 = vadd.f32 %v431, %v603
    %605 = vmatprep.mubr.f32.mxu0 0.0
    %606 = vmatmul.mubr.f32.gmra.mxu0 %v447
    %v607 = vpop.f32.mrf.mxu0
    %v608 = vadd.f32 %v436, %v607
    %v609 = vpop.f32.mrf.mxu0
    %v610 = vadd.f32 %v436, %v609
    %611 = vmatprep.mubr.f32.mxu0 0.0
    %612 = vmatmul.mubr.f32.gmra.mxu0 %v450
    %v613 = vpop.f32.mrf.mxu0
    %v614 = vadd.f32 %v441, %v613
    %v615 = vpop.f32.mrf.mxu0
    %v616 = vadd.f32 %v441, %v615
    %617 = vdwg.mxu0
    %v618 = vmax.f32 %v519, 0.0
    %v619 = vmax.f32 %v521, 0.0
    %v620 = vmax.f32 %v602, 0.0
    %v621 = vmax.f32 %v604, 0.0
    %v622 = vmax.f32 %v525, 0.0
    %v623 = vmax.f32 %v527, 0.0
    %v624 = vmax.f32 %v608, 0.0
    %v625 = vmax.f32 %v610, 0.0
    %v626 = vmax.f32 %v531, 0.0
    %v627 = vmax.f32 %v533, 0.0
    %v628 = vmax.f32 %v614, 0.0
    %v629 = vmax.f32 %v616, 0.0
    %s630 = scalar_lea.vmem %s2, 96
    %v631 = vld [vmem:[%s630] sm:$0xff]
    %v632 = vld [vmem:[%s630 + $0x8] sm:$0xff]
    %v633 = vld [vmem:[%s630 + $0x10] sm:$0xff]
    %s634 = scalar_lea.vmem %s3, 96
    %v635 = vld [vmem:[%s634] sm:$0xff]
    %v636 = vld [vmem:[%s634 + $0x8] sm:$0xff]
    %v637 = vld [vmem:[%s634 + $0x10] sm:$0xff]
    %639 = vset.pattern.permute.xlu0 0
    %640 = vperm.xlu0 %639, %v635
    %v641 = vpop.permute.xlu0 %640
    %644 = vset.pattern.permute.xlu0 0
    %645 = vperm.xlu0 %644, %v636
    %v646 = vpop.permute.xlu0 %645
    %649 = vset.pattern.permute.xlu0 0
    %650 = vperm.xlu0 %649, %v637
    %v651 = vpop.permute.xlu0 %650
    %v654 = vsel %vm73, %v631, 0
    %v657 = vsel %vm73, %v632, 0
    %v660 = vsel %vm73, %v633, 0
    %662 = vmatprep.subr.mxu0 0.0
    %663 = vmatpush1.msra.mxu0 0.0
    %664 = vmatprep.subr.mxu0 0.0
    %665 = vmatpush1.msra.mxu0 0.0
    %666 = vmatprep.subr.mxu0 0.0
    %667 = vmatpush1.msra.mxu0 0.0
    %668 = vmatprep.subr.mxu0 0.0
    %669 = vmatpush1.msra.mxu0 0.0
    %670 = vmatprep.subr.mxu0 0.0
    %671 = vmatpush1.msra.mxu0 0.0
    %672 = vmatprep.subr.mxu0 0.0
    %673 = vmatpush1.msra.mxu0 0.0
    %674 = vmatprep.subr.mxu0 0.0
    %675 = vmatpush1.msra.mxu0 0.0
    %676 = vmatprep.subr.mxu0 0.0
    %677 = vmatpush1.msra.mxu0 0.0
    %678 = vmatprep.subr.mxu0 0.0
    %679 = vmatpush1.msra.mxu0 0.0
    %680 = vmatprep.subr.mxu0 0.0
    %681 = vmatpush1.msra.mxu0 0.0
    %682 = vmatprep.subr.mxu0 0.0
    %683 = vmatpush1.msra.mxu0 0.0
    %684 = vmatprep.subr.mxu0 0.0
    %685 = vmatpush1.msra.mxu0 0.0
    %686 = vmatprep.subr.mxu0 0.0
    %687 = vmatpush1.msra.mxu0 0.0
    %688 = vmatprep.subr.mxu0 %v627
    %689 = vmatpush1.msra.mxu0 %v626
    %690 = vmatprep.subr.mxu0 %v623
    %691 = vmatpush1.msra.mxu0 %v622
    %692 = vmatprep.subr.mxu0 %v619
    %693 = vmatpush1.msra.mxu0 %v618
    %694 = vmatprep.subr.mxu0 0.0
    %695 = vmatpush2.msra.mxu0 0.0
    %696 = vmatprep.subr.mxu0 0.0
    %697 = vmatpush2.msra.mxu0 0.0
    %698 = vmatprep.subr.mxu0 0.0
    %699 = vmatpush2.msra.mxu0 0.0
    %700 = vmatprep.subr.mxu0 0.0
    %701 = vmatpush2.msra.mxu0 0.0
    %702 = vmatprep.subr.mxu0 0.0
    %703 = vmatpush2.msra.mxu0 0.0
    %704 = vmatprep.subr.mxu0 0.0
    %705 = vmatpush2.msra.mxu0 0.0
    %706 = vmatprep.subr.mxu0 0.0
    %707 = vmatpush2.msra.mxu0 0.0
    %708 = vmatprep.subr.mxu0 0.0
    %709 = vmatpush2.msra.mxu0 0.0
    %710 = vmatprep.subr.mxu0 0.0
    %711 = vmatpush2.msra.mxu0 0.0
    %712 = vmatprep.subr.mxu0 0.0
    %713 = vmatpush2.msra.mxu0 0.0
    %714 = vmatprep.subr.mxu0 0.0
    %715 = vmatpush2.msra.mxu0 0.0
    %716 = vmatprep.subr.mxu0 0.0
    %717 = vmatpush2.msra.mxu0 0.0
    %718 = vmatprep.subr.mxu0 0.0
    %719 = vmatpush2.msra.mxu0 0.0
    %720 = vmatprep.subr.mxu0 0.0
    %721 = vmatpush2.msra.mxu0 0.0
    %722 = vmatprep.subr.mxu0 0.0
    %723 = vmatpush2.msra.mxu0 0.0
    %724 = vmatprep.subr.mxu0 0.0
    %725 = vmatpush2.msra.mxu0 0.0
    %726 = vmatprep.mubr.f32.mxu0 0.0
    %727 = vmatmul.mubr.f32.gmra.mxu0 %v654
    %v728 = vpop.f32.mrf.mxu0
    %v729 = vadd.f32 %v641, %v728
    %v730 = vpop.f32.mrf.mxu0
    %v731 = vadd.f32 %v641, %v730
    %732 = vmatprep.mubr.f32.mxu0 0.0
    %733 = vmatmul.mubr.f32.gmra.mxu0 %v657
    %v734 = vpop.f32.mrf.mxu0
    %v735 = vadd.f32 %v646, %v734
    %v736 = vpop.f32.mrf.mxu0
    %v737 = vadd.f32 %v646, %v736
    %738 = vmatprep.mubr.f32.mxu0 0.0
    %739 = vmatmul.mubr.f32.gmra.mxu0 %v660
    %v740 = vpop.f32.mrf.mxu0
    %v741 = vadd.f32 %v651, %v740
    %v742 = vpop.f32.mrf.mxu0
    %v743 = vadd.f32 %v651, %v742
    %744 = vdwg.mxu0
    %745 = vmatprep.subr.mxu0 0.0
    %746 = vmatpush1.msra.mxu0 0.0
    %747 = vmatprep.subr.mxu0 0.0
    %748 = vmatpush1.msra.mxu0 0.0
    %749 = vmatprep.subr.mxu0 0.0
    %750 = vmatpush1.msra.mxu0 0.0
    %751 = vmatprep.subr.mxu0 0.0
    %752 = vmatpush1.msra.mxu0 0.0
    %753 = vmatprep.subr.mxu0 0.0
    %754 = vmatpush1.msra.mxu0 0.0
    %755 = vmatprep.subr.mxu0 0.0
    %756 = vmatpush1.msra.mxu0 0.0
    %757 = vmatprep.subr.mxu0 0.0
    %758 = vmatpush1.msra.mxu0 0.0
    %759 = vmatprep.subr.mxu0 0.0
    %760 = vmatpush1.msra.mxu0 0.0
    %761 = vmatprep.subr.mxu0 0.0
    %762 = vmatpush1.msra.mxu0 0.0
    %763 = vmatprep.subr.mxu0 0.0
    %764 = vmatpush1.msra.mxu0 0.0
    %765 = vmatprep.subr.mxu0 0.0
    %766 = vmatpush1.msra.mxu0 0.0
    %767 = vmatprep.subr.mxu0 0.0
    %768 = vmatpush1.msra.mxu0 0.0
    %769 = vmatprep.subr.mxu0 0.0
    %770 = vmatpush1.msra.mxu0 0.0
    %771 = vmatprep.subr.mxu0 %v629
    %772 = vmatpush1.msra.mxu0 %v628
    %773 = vmatprep.subr.mxu0 %v625
    %774 = vmatpush1.msra.mxu0 %v624
    %775 = vmatprep.subr.mxu0 %v621
    %776 = vmatpush1.msra.mxu0 %v620
    %777 = vmatprep.subr.mxu0 0.0
    %778 = vmatpush2.msra.mxu0 0.0
    %779 = vmatprep.subr.mxu0 0.0
    %780 = vmatpush2.msra.mxu0 0.0
    %781 = vmatprep.subr.mxu0 0.0
    %782 = vmatpush2.msra.mxu0 0.0
    %783 = vmatprep.subr.mxu0 0.0
    %784 = vmatpush2.msra.mxu0 0.0
    %785 = vmatprep.subr.mxu0 0.0
    %786 = vmatpush2.msra.mxu0 0.0
    %787 = vmatprep.subr.mxu0 0.0
    %788 = vmatpush2.msra.mxu0 0.0
    %789 = vmatprep.subr.mxu0 0.0
    %790 = vmatpush2.msra.mxu0 0.0
    %791 = vmatprep.subr.mxu0 0.0
    %792 = vmatpush2.msra.mxu0 0.0
    %793 = vmatprep.subr.mxu0 0.0
    %794 = vmatpush2.msra.mxu0 0.0
    %795 = vmatprep.subr.mxu0 0.0
    %796 = vmatpush2.msra.mxu0 0.0
    %797 = vmatprep.subr.mxu0 0.0
    %798 = vmatpush2.msra.mxu0 0.0
    %799 = vmatprep.subr.mxu0 0.0
    %800 = vmatpush2.msra.mxu0 0.0
    %801 = vmatprep.subr.mxu0 0.0
    %802 = vmatpush2.msra.mxu0 0.0
    %803 = vmatprep.subr.mxu0 0.0
    %804 = vmatpush2.msra.mxu0 0.0
    %805 = vmatprep.subr.mxu0 0.0
    %806 = vmatpush2.msra.mxu0 0.0
    %807 = vmatprep.subr.mxu0 0.0
    %808 = vmatpush2.msra.mxu0 0.0
    %809 = vmatprep.mubr.f32.mxu0 0.0
    %810 = vmatmul.mubr.f32.gmra.mxu0 %v654
    %v811 = vpop.f32.mrf.mxu0
    %v812 = vadd.f32 %v641, %v811
    %v813 = vpop.f32.mrf.mxu0
    %v814 = vadd.f32 %v641, %v813
    %815 = vmatprep.mubr.f32.mxu0 0.0
    %816 = vmatmul.mubr.f32.gmra.mxu0 %v657
    %v817 = vpop.f32.mrf.mxu0
    %v818 = vadd.f32 %v646, %v817
    %v819 = vpop.f32.mrf.mxu0
    %v820 = vadd.f32 %v646, %v819
    %821 = vmatprep.mubr.f32.mxu0 0.0
    %822 = vmatmul.mubr.f32.gmra.mxu0 %v660
    %v823 = vpop.f32.mrf.mxu0
    %v824 = vadd.f32 %v651, %v823
    %v825 = vpop.f32.mrf.mxu0
    %v826 = vadd.f32 %v651, %v825
    %827 = vdwg.mxu0
    %v828 = vmax.f32 %v729, 0.0
    %v829 = vmax.f32 %v731, 0.0
    %v830 = vmax.f32 %v812, 0.0
    %v831 = vmax.f32 %v814, 0.0
    %v832 = vmax.f32 %v735, 0.0
    %v833 = vmax.f32 %v737, 0.0
    %v834 = vmax.f32 %v818, 0.0
    %v835 = vmax.f32 %v820, 0.0
    %v836 = vmax.f32 %v741, 0.0
    %v837 = vmax.f32 %v743, 0.0
    %v838 = vmax.f32 %v824, 0.0
    %v839 = vmax.f32 %v826, 0.0
    %s840 = scalar_lea.vmem %s2, 120
    %v841 = vld [vmem:[%s840] sm:$0xff]
    %v842 = vld [vmem:[%s840 + $0x8] sm:$0xff]
    %v843 = vld [vmem:[%s840 + $0x10] sm:$0xff]
    %s844 = scalar_lea.vmem %s3, 120
    %v845 = vld [vmem:[%s844] sm:$0xff]
    %v846 = vld [vmem:[%s844 + $0x8] sm:$0xff]
    %v847 = vld [vmem:[%s844 + $0x10] sm:$0xff]
    %849 = vset.pattern.permute.xlu0 0
    %850 = vperm.xlu0 %849, %v845
    %v851 = vpop.permute.xlu0 %850
    %854 = vset.pattern.permute.xlu0 0
    %855 = vperm.xlu0 %854, %v846
    %v856 = vpop.permute.xlu0 %855
    %859 = vset.pattern.permute.xlu0 0
    %860 = vperm.xlu0 %859, %v847
    %v861 = vpop.permute.xlu0 %860
    %v864 = vsel %vm73, %v841, 0
    %v867 = vsel %vm73, %v842, 0
    %v870 = vsel %vm73, %v843, 0
    %872 = vmatprep.subr.mxu0 0.0
    %873 = vmatpush1.msra.mxu0 0.0
    %874 = vmatprep.subr.mxu0 0.0
    %875 = vmatpush1.msra.mxu0 0.0
    %876 = vmatprep.subr.mxu0 0.0
    %877 = vmatpush1.msra.mxu0 0.0
    %878 = vmatprep.subr.mxu0 0.0
    %879 = vmatpush1.msra.mxu0 0.0
    %880 = vmatprep.subr.mxu0 0.0
    %881 = vmatpush1.msra.mxu0 0.0
    %882 = vmatprep.subr.mxu0 0.0
    %883 = vmatpush1.msra.mxu0 0.0
    %884 = vmatprep.subr.mxu0 0.0
    %885 = vmatpush1.msra.mxu0 0.0
    %886 = vmatprep.subr.mxu0 0.0
    %887 = vmatpush1.msra.mxu0 0.0
    %888 = vmatprep.subr.mxu0 0.0
    %889 = vmatpush1.msra.mxu0 0.0
    %890 = vmatprep.subr.mxu0 0.0
    %891 = vmatpush1.msra.mxu0 0.0
    %892 = vmatprep.subr.mxu0 0.0
    %893 = vmatpush1.msra.mxu0 0.0
    %894 = vmatprep.subr.mxu0 0.0
    %895 = vmatpush1.msra.mxu0 0.0
    %896 = vmatprep.subr.mxu0 0.0
    %897 = vmatpush1.msra.mxu0 0.0
    %898 = vmatprep.subr.mxu0 %v837
    %899 = vmatpush1.msra.mxu0 %v836
    %900 = vmatprep.subr.mxu0 %v833
    %901 = vmatpush1.msra.mxu0 %v832
    %902 = vmatprep.subr.mxu0 %v829
    %903 = vmatpush1.msra.mxu0 %v828
    %904 = vmatprep.subr.mxu0 0.0
    %905 = vmatpush2.msra.mxu0 0.0
    %906 = vmatprep.subr.mxu0 0.0
    %907 = vmatpush2.msra.mxu0 0.0
    %908 = vmatprep.subr.mxu0 0.0
    %909 = vmatpush2.msra.mxu0 0.0
    %910 = vmatprep.subr.mxu0 0.0
    %911 = vmatpush2.msra.mxu0 0.0
    %912 = vmatprep.subr.mxu0 0.0
    %913 = vmatpush2.msra.mxu0 0.0
    %914 = vmatprep.subr.mxu0 0.0
    %915 = vmatpush2.msra.mxu0 0.0
    %916 = vmatprep.subr.mxu0 0.0
    %917 = vmatpush2.msra.mxu0 0.0
    %918 = vmatprep.subr.mxu0 0.0
    %919 = vmatpush2.msra.mxu0 0.0
    %920 = vmatprep.subr.mxu0 0.0
    %921 = vmatpush2.msra.mxu0 0.0
    %922 = vmatprep.subr.mxu0 0.0
    %923 = vmatpush2.msra.mxu0 0.0
    %924 = vmatprep.subr.mxu0 0.0
    %925 = vmatpush2.msra.mxu0 0.0
    %926 = vmatprep.subr.mxu0 0.0
    %927 = vmatpush2.msra.mxu0 0.0
    %928 = vmatprep.subr.mxu0 0.0
    %929 = vmatpush2.msra.mxu0 0.0
    %930 = vmatprep.subr.mxu0 0.0
    %931 = vmatpush2.msra.mxu0 0.0
    %932 = vmatprep.subr.mxu0 0.0
    %933 = vmatpush2.msra.mxu0 0.0
    %934 = vmatprep.subr.mxu0 0.0
    %935 = vmatpush2.msra.mxu0 0.0
    %936 = vmatprep.mubr.f32.mxu0 0.0
    %937 = vmatmul.mubr.f32.gmra.mxu0 %v864
    %v938 = vpop.f32.mrf.mxu0
    %v939 = vadd.f32 %v851, %v938
    %v940 = vpop.f32.mrf.mxu0
    %v941 = vadd.f32 %v851, %v940
    %942 = vmatprep.mubr.f32.mxu0 0.0
    %943 = vmatmul.mubr.f32.gmra.mxu0 %v867
    %v944 = vpop.f32.mrf.mxu0
    %v945 = vadd.f32 %v856, %v944
    %v946 = vpop.f32.mrf.mxu0
    %v947 = vadd.f32 %v856, %v946
    %948 = vmatprep.mubr.f32.mxu0 0.0
    %949 = vmatmul.mubr.f32.gmra.mxu0 %v870
    %v950 = vpop.f32.mrf.mxu0
    %v951 = vadd.f32 %v861, %v950
    %v952 = vpop.f32.mrf.mxu0
    %v953 = vadd.f32 %v861, %v952
    %954 = vdwg.mxu0
    %955 = vmatprep.subr.mxu0 0.0
    %956 = vmatpush1.msra.mxu0 0.0
    %957 = vmatprep.subr.mxu0 0.0
    %958 = vmatpush1.msra.mxu0 0.0
    %959 = vmatprep.subr.mxu0 0.0
    %960 = vmatpush1.msra.mxu0 0.0
    %961 = vmatprep.subr.mxu0 0.0
    %962 = vmatpush1.msra.mxu0 0.0
    %963 = vmatprep.subr.mxu0 0.0
    %964 = vmatpush1.msra.mxu0 0.0
    %965 = vmatprep.subr.mxu0 0.0
    %966 = vmatpush1.msra.mxu0 0.0
    %967 = vmatprep.subr.mxu0 0.0
    %968 = vmatpush1.msra.mxu0 0.0
    %969 = vmatprep.subr.mxu0 0.0
    %970 = vmatpush1.msra.mxu0 0.0
    %971 = vmatprep.subr.mxu0 0.0
    %972 = vmatpush1.msra.mxu0 0.0
    %973 = vmatprep.subr.mxu0 0.0
    %974 = vmatpush1.msra.mxu0 0.0
    %975 = vmatprep.subr.mxu0 0.0
    %976 = vmatpush1.msra.mxu0 0.0
    %977 = vmatprep.subr.mxu0 0.0
    %978 = vmatpush1.msra.mxu0 0.0
    %979 = vmatprep.subr.mxu0 0.0
    %980 = vmatpush1.msra.mxu0 0.0
    %981 = vmatprep.subr.mxu0 %v839
    %982 = vmatpush1.msra.mxu0 %v838
    %983 = vmatprep.subr.mxu0 %v835
    %984 = vmatpush1.msra.mxu0 %v834
    %985 = vmatprep.subr.mxu0 %v831
    %986 = vmatpush1.msra.mxu0 %v830
    %987 = vmatprep.subr.mxu0 0.0
    %988 = vmatpush2.msra.mxu0 0.0
    %989 = vmatprep.subr.mxu0 0.0
    %990 = vmatpush2.msra.mxu0 0.0
    %991 = vmatprep.subr.mxu0 0.0
    %992 = vmatpush2.msra.mxu0 0.0
    %993 = vmatprep.subr.mxu0 0.0
    %994 = vmatpush2.msra.mxu0 0.0
    %995 = vmatprep.subr.mxu0 0.0
    %996 = vmatpush2.msra.mxu0 0.0
    %997 = vmatprep.subr.mxu0 0.0
    %998 = vmatpush2.msra.mxu0 0.0
    %999 = vmatprep.subr.mxu0 0.0
    %1000 = vmatpush2.msra.mxu0 0.0
    %1001 = vmatprep.subr.mxu0 0.0
    %1002 = vmatpush2.msra.mxu0 0.0
    %1003 = vmatprep.subr.mxu0 0.0
    %1004 = vmatpush2.msra.mxu0 0.0
    %1005 = vmatprep.subr.mxu0 0.0
    %1006 = vmatpush2.msra.mxu0 0.0
    %1007 = vmatprep.subr.mxu0 0.0
    %1008 = vmatpush2.msra.mxu0 0.0
    %1009 = vmatprep.subr.mxu0 0.0
    %1010 = vmatpush2.msra.mxu0 0.0
    %1011 = vmatprep.subr.mxu0 0.0
    %1012 = vmatpush2.msra.mxu0 0.0
    %1013 = vmatprep.subr.mxu0 0.0
    %1014 = vmatpush2.msra.mxu0 0.0
    %1015 = vmatprep.subr.mxu0 0.0
    %1016 = vmatpush2.msra.mxu0 0.0
    %1017 = vmatprep.subr.mxu0 0.0
    %1018 = vmatpush2.msra.mxu0 0.0
    %1019 = vmatprep.mubr.f32.mxu0 0.0
    %1020 = vmatmul.mubr.f32.gmra.mxu0 %v864
    %v1021 = vpop.f32.mrf.mxu0
    %v1022 = vadd.f32 %v851, %v1021
    %v1023 = vpop.f32.mrf.mxu0
    %v1024 = vadd.f32 %v851, %v1023
    %1025 = vmatprep.mubr.f32.mxu0 0.0
    %1026 = vmatmul.mubr.f32.gmra.mxu0 %v867
    %v1027 = vpop.f32.mrf.mxu0
    %v1028 = vadd.f32 %v856, %v1027
    %v1029 = vpop.f32.mrf.mxu0
    %v1030 = vadd.f32 %v856, %v1029
    %1031 = vmatprep.mubr.f32.mxu0 0.0
    %1032 = vmatmul.mubr.f32.gmra.mxu0 %v870
    %v1033 = vpop.f32.mrf.mxu0
    %v1034 = vadd.f32 %v861, %v1033
    %v1035 = vpop.f32.mrf.mxu0
    %v1036 = vadd.f32 %v861, %v1035
    %1037 = vdwg.mxu0
    %v1038 = vmax.f32 %v939, 0.0
    %v1039 = vmax.f32 %v941, 0.0
    %v1040 = vmax.f32 %v1022, 0.0
    %v1041 = vmax.f32 %v1024, 0.0
    %v1042 = vmax.f32 %v945, 0.0
    %v1043 = vmax.f32 %v947, 0.0
    %v1044 = vmax.f32 %v1028, 0.0
    %v1045 = vmax.f32 %v1030, 0.0
    %v1046 = vmax.f32 %v951, 0.0
    %v1047 = vmax.f32 %v953, 0.0
    %v1048 = vmax.f32 %v1034, 0.0
    %v1049 = vmax.f32 %v1036, 0.0
    %s1050 = scalar_lea.vmem %s2, 144
    %v1051 = vld [vmem:[%s1050] sm:$0xff]
    %v1052 = vld [vmem:[%s1050 + $0x8] sm:$0xff]
    %v1053 = vld [vmem:[%s1050 + $0x10] sm:$0xff]
    %s1054 = scalar_lea.vmem %s3, 144
    %v1055 = vld [vmem:[%s1054] sm:$0xff]
    %v1056 = vld [vmem:[%s1054 + $0x8] sm:$0xff]
    %v1057 = vld [vmem:[%s1054 + $0x10] sm:$0xff]
    %1059 = vset.pattern.permute.xlu0 0
    %1060 = vperm.xlu0 %1059, %v1055
    %v1061 = vpop.permute.xlu0 %1060
    %1064 = vset.pattern.permute.xlu0 0
    %1065 = vperm.xlu0 %1064, %v1056
    %v1066 = vpop.permute.xlu0 %1065
    %1068 = vset.pattern.permute.xlu0 0
    %1069 = vperm.xlu0 %1068, %v1057
    %v1070 = vpop.permute.xlu0 %1069
    %v1072 = vsel %vm73, %v1051, 0
    %v1075 = vsel %vm73, %v1052, 0
    %v1078 = vsel %vm73, %v1053, 0
    %1080 = vmatprep.subr.mxu0 0.0
    %1081 = vmatpush1.msra.mxu0 0.0
    %1082 = vmatprep.subr.mxu0 0.0
    %1083 = vmatpush1.msra.mxu0 0.0
    %1084 = vmatprep.subr.mxu0 0.0
    %1085 = vmatpush1.msra.mxu0 0.0
    %1086 = vmatprep.subr.mxu0 0.0
    %1087 = vmatpush1.msra.mxu0 0.0
    %1088 = vmatprep.subr.mxu0 0.0
    %1089 = vmatpush1.msra.mxu0 0.0
    %1090 = vmatprep.subr.mxu0 0.0
    %1091 = vmatpush1.msra.mxu0 0.0
    %1092 = vmatprep.subr.mxu0 0.0
    %1093 = vmatpush1.msra.mxu0 0.0
    %1094 = vmatprep.subr.mxu0 0.0
    %1095 = vmatpush1.msra.mxu0 0.0
    %1096 = vmatprep.subr.mxu0 0.0
    %1097 = vmatpush1.msra.mxu0 0.0
    %1098 = vmatprep.subr.mxu0 0.0
    %1099 = vmatpush1.msra.mxu0 0.0
    %1100 = vmatprep.subr.mxu0 0.0
    %1101 = vmatpush1.msra.mxu0 0.0
    %1102 = vmatprep.subr.mxu0 0.0
    %1103 = vmatpush1.msra.mxu0 0.0
    %1104 = vmatprep.subr.mxu0 0.0
    %1105 = vmatpush1.msra.mxu0 0.0
    %1106 = vmatprep.subr.mxu0 %v1047
    %1107 = vmatpush1.msra.mxu0 %v1046
    %1108 = vmatprep.subr.mxu0 %v1043
    %1109 = vmatpush1.msra.mxu0 %v1042
    %1110 = vmatprep.subr.mxu0 %v1039
    %1111 = vmatpush1.msra.mxu0 %v1038
    %1112 = vmatprep.subr.mxu0 0.0
    %1113 = vmatpush2.msra.mxu0 0.0
    %1114 = vmatprep.subr.mxu0 0.0
    %1115 = vmatpush2.msra.mxu0 0.0
    %1116 = vmatprep.subr.mxu0 0.0
    %1117 = vmatpush2.msra.mxu0 0.0
    %1118 = vmatprep.subr.mxu0 0.0
    %1119 = vmatpush2.msra.mxu0 0.0
    %1120 = vmatprep.subr.mxu0 0.0
    %1121 = vmatpush2.msra.mxu0 0.0
    %1122 = vmatprep.subr.mxu0 0.0
    %1123 = vmatpush2.msra.mxu0 0.0
    %1124 = vmatprep.subr.mxu0 0.0
    %1125 = vmatpush2.msra.mxu0 0.0
    %1126 = vmatprep.subr.mxu0 0.0
    %1127 = vmatpush2.msra.mxu0 0.0
    %1128 = vmatprep.subr.mxu0 0.0
    %1129 = vmatpush2.msra.mxu0 0.0
    %1130 = vmatprep.subr.mxu0 0.0
    %1131 = vmatpush2.msra.mxu0 0.0
    %1132 = vmatprep.subr.mxu0 0.0
    %1133 = vmatpush2.msra.mxu0 0.0
    %1134 = vmatprep.subr.mxu0 0.0
    %1135 = vmatpush2.msra.mxu0 0.0
    %1136 = vmatprep.subr.mxu0 0.0
    %1137 = vmatpush2.msra.mxu0 0.0
    %1138 = vmatprep.subr.mxu0 0.0
    %1139 = vmatpush2.msra.mxu0 0.0
    %1140 = vmatprep.subr.mxu0 0.0
    %1141 = vmatpush2.msra.mxu0 0.0
    %1142 = vmatprep.subr.mxu0 0.0
    %1143 = vmatpush2.msra.mxu0 0.0
    %1144 = vmatprep.mubr.f32.mxu0 0.0
    %1145 = vmatmul.mubr.f32.gmra.mxu0 %v1072
    %v1146 = vpop.f32.mrf.mxu0
    %v1147 = vadd.f32 %v1061, %v1146
    %v1148 = vpop.f32.mrf.mxu0
    %v1149 = vadd.f32 %v1061, %v1148
    %1150 = vmatprep.mubr.f32.mxu0 0.0
    %1151 = vmatmul.mubr.f32.gmra.mxu0 %v1075
    %v1152 = vpop.f32.mrf.mxu0
    %v1153 = vpop.f32.mrf.mxu0
    %1154 = vmatprep.mubr.f32.mxu0 0.0
    %1155 = vmatmul.mubr.f32.gmra.mxu0 %v1078
    %v1156 = vpop.f32.mrf.mxu0
    %v1157 = vpop.f32.mrf.mxu0
    %1158 = vdwg.mxu0
    %1159 = vmatprep.subr.mxu0 0.0
    %1160 = vmatpush1.msra.mxu0 0.0
    %1161 = vmatprep.subr.mxu0 0.0
    %1162 = vmatpush1.msra.mxu0 0.0
    %1163 = vmatprep.subr.mxu0 0.0
    %1164 = vmatpush1.msra.mxu0 0.0
    %1165 = vmatprep.subr.mxu0 0.0
    %1166 = vmatpush1.msra.mxu0 0.0
    %1167 = vmatprep.subr.mxu0 0.0
    %1168 = vmatpush1.msra.mxu0 0.0
    %1169 = vmatprep.subr.mxu0 0.0
    %1170 = vmatpush1.msra.mxu0 0.0
    %1171 = vmatprep.subr.mxu0 0.0
    %1172 = vmatpush1.msra.mxu0 0.0
    %1173 = vmatprep.subr.mxu0 0.0
    %1174 = vmatpush1.msra.mxu0 0.0
    %1175 = vmatprep.subr.mxu0 0.0
    %1176 = vmatpush1.msra.mxu0 0.0
    %1177 = vmatprep.subr.mxu0 0.0
    %1178 = vmatpush1.msra.mxu0 0.0
    %1179 = vmatprep.subr.mxu0 0.0
    %1180 = vmatpush1.msra.mxu0 0.0
    %1181 = vmatprep.subr.mxu0 0.0
    %1182 = vmatpush1.msra.mxu0 0.0
    %1183 = vmatprep.subr.mxu0 0.0
    %1184 = vmatpush1.msra.mxu0 0.0
    %1185 = vmatprep.subr.mxu0 %v1049
    %1186 = vmatpush1.msra.mxu0 %v1048
    %1187 = vmatprep.subr.mxu0 %v1045
    %1188 = vmatpush1.msra.mxu0 %v1044
    %1189 = vmatprep.subr.mxu0 %v1041
    %1190 = vmatpush1.msra.mxu0 %v1040
    %1191 = vmatprep.subr.mxu0 0.0
    %1192 = vmatpush2.msra.mxu0 0.0
    %1193 = vmatprep.subr.mxu0 0.0
    %1194 = vmatpush2.msra.mxu0 0.0
    %1195 = vmatprep.subr.mxu0 0.0
    %1196 = vmatpush2.msra.mxu0 0.0
    %1197 = vmatprep.subr.mxu0 0.0
    %1198 = vmatpush2.msra.mxu0 0.0
    %1199 = vmatprep.subr.mxu0 0.0
    %1200 = vmatpush2.msra.mxu0 0.0
    %1201 = vmatprep.subr.mxu0 0.0
    %1202 = vmatpush2.msra.mxu0 0.0
    %1203 = vmatprep.subr.mxu0 0.0
    %1204 = vmatpush2.msra.mxu0 0.0
    %1205 = vmatprep.subr.mxu0 0.0
    %1206 = vmatpush2.msra.mxu0 0.0
    %1207 = vmatprep.subr.mxu0 0.0
    %1208 = vmatpush2.msra.mxu0 0.0
    %1209 = vmatprep.subr.mxu0 0.0
    %1210 = vmatpush2.msra.mxu0 0.0
    %1211 = vmatprep.subr.mxu0 0.0
    %1212 = vmatpush2.msra.mxu0 0.0
    %1213 = vmatprep.subr.mxu0 0.0
    %1214 = vmatpush2.msra.mxu0 0.0
    %1215 = vmatprep.subr.mxu0 0.0
    %1216 = vmatpush2.msra.mxu0 0.0
    %1217 = vmatprep.subr.mxu0 0.0
    %1218 = vmatpush2.msra.mxu0 0.0
    %1219 = vmatprep.subr.mxu0 0.0
    %1220 = vmatpush2.msra.mxu0 0.0
    %1221 = vmatprep.subr.mxu0 0.0
    %1222 = vmatpush2.msra.mxu0 0.0
    %1223 = vmatprep.mubr.f32.mxu0 0.0
    %1224 = vmatmul.mubr.f32.gmra.mxu0 %v1072
    %v1225 = vpop.f32.mrf.mxu0
    %v1226 = vadd.f32 %v1061, %v1225
    %v1227 = vpop.f32.mrf.mxu0
    %v1228 = vadd.f32 %v1061, %v1227
    %1229 = vmatprep.mubr.f32.mxu0 0.0
    %1230 = vmatmul.mubr.f32.gmra.mxu0 %v1075
    %v1231 = vpop.f32.mrf.mxu0
    %v1232 = vpop.f32.mrf.mxu0
    %1233 = vmatprep.mubr.f32.mxu0 0.0
    %1234 = vmatmul.mubr.f32.gmra.mxu0 %v1078
    %v1235 = vpop.f32.mrf.mxu0
    %v1236 = vpop.f32.mrf.mxu0
    %1237 = vdwg.mxu0
    %1238 = vst [vmem:[#allocation7] sm:$0xff] %v1147
    %1239 = vst [vmem:[#allocation7 + $0x8] sm:$0xff] %v1149
    %1240 = vst [vmem:[#allocation7 + $0x10] sm:$0xff] %v1226
    %1241 = vst [vmem:[#allocation7 + $0x18] sm:$0xff] %v1228
    // Predicated region
    $region26: #{tpu_custom_call.1} parent=1 // pred_check
      _
    $region27: #{tpu_custom_call.1} parent=1 // pred_check_branch
      %1243 = sbr.rel (0) target = $region29
    $region28: #{tpu_custom_call.1} parent=1 // pred_region
      %s1245 = ssub.s32 512, 512
      %1246 = vsyncadd [#allocation4], %s1245
      %s1248 = sshll.u32 [#allocation7], 4
      %s1249 = int_to_ptr.vmem [resolvable:$true] %s1248
      %1251 = dma.vmem_to_hbm [thread:$0]  %s1249, 512, %s4, [#allocation4]
    $region29: #{tpu_custom_call.1} parent=1 // pred_fallthru
      _
    // Predicated region
    $region30: #{tpu_custom_call.1} parent=1 // pred_check
      _
    $region31: #{tpu_custom_call.1} parent=1 // pred_check_branch
      %1253 = sbr.rel (0) target = $region33
    $region32: #{tpu_custom_call.1} parent=1 // pred_region
      %1254 = dma.done [#allocation4], 512
    $region33: #{tpu_custom_call.1} parent=1 // pred_fallthru
      _
    %1255 = vsyncpa [#allocation3], 1
    %1256 = vsyncpa [#allocation6], 1
    %1257 = vsyncpa [#allocation4], 1

</llo_original>
